<compile_context>
chip_gen: v6e
topology: v6e:2x2x1
jax: 0.10.0
libtpu: 0.0.40
codegen_flags: <defaults>
</compile_context>

<pallas_src>
import jax
import jax.numpy as jnp
from jax import lax
from jax.experimental import pallas as pl
from jax.experimental.pallas import tpu as pltpu

FPAD = 128            # padded feature width inside the kernel (lane axis)
OUT_W = 32            # packed output width written to HBM (d: 0..16, p: 17..27)
TN_MAX = 1024         # max batch tile (sublane axis)
MIN_SPLIT_ROWS = 256  # only split a tile across TensorCores if halves >= this
P_OFF = 17            # lane offset where outputs_p is packed in the output block

# real layer dims
INV_DIMS = [(11, 64), (64, 64), (64, 64), (64, 17)]   # layers 0..3 (inverse net)
FWD_DIMS = [(17, 64), (64, 64), (64, 64), (64, 11)]   # layers 4..7 (forward net)
ALL_DIMS = INV_DIMS + FWD_DIMS


def _tensorcores_per_device() -> int:
    """2 TensorCores share one Pallas grid on v4/v5p (megacore) and v7x."""
    try:
        kind = jax.devices()[0].device_kind.lower()
    except Exception:
        return 1
    if "v7" in kind or "v4" in kind:
        return 2
    if "v5p" in kind or kind.strip().endswith("v5"):
        return 2
    return 1


_NUM_TC = _tensorcores_per_device()


def _round_up(a, b):
    return ((a + b - 1) // b) * b


def _choose_tile(n):
    """Pick (batch tile, padded batch) — generation aware."""
    n8 = _round_up(max(n, 1), 8)
    n_tiles = max(1, -(-n8 // TN_MAX))
    # Only multi-TC chips (v4/v5p/v7x) benefit from splitting a single full
    # tile across the 'parallel' grid axis, and only if each half is big
    # enough to keep the MXU M dimension filled.
    if _NUM_TC >= 2 and n_tiles == 1 and n8 >= 2 * MIN_SPLIT_ROWS:
        n_tiles = 2
    tn = _round_up(-(-n8 // n_tiles), 8)
    n_pad = _round_up(n8, tn)
    return tn, n_pad


def tnn_kernel(x_ref, w_ref, b_ref, out_ref, xpad_ref):
    """One batch tile: inverse MLP + sigmoid/softmax head + forward MLP.

    Writes a single packed (tn, OUT_W) block: d in lanes [0,17), p in [17,28).
    """
    # --- zero-extend the 11-lane input block to 128 lanes in VMEM scratch ---
    xpad_ref[...] = jnp.zeros_like(xpad_ref)
    xpad_ref[:, 0:11] = x_ref[...]
    h = xpad_ref[...]                                         # (tn, FPAD) f32

    # ---- inverse design network: 3x (Linear + ReLU) + Linear (bf16 MXU) ----
    for l in range(3):
        h = jnp.dot(h.astype(jnp.bfloat16), w_ref[l],
                    preferred_element_type=jnp.float32)
        h = jnp.maximum(h + b_ref[l], 0.0)
    d_raw = jnp.dot(h.astype(jnp.bfloat16), w_ref[3],
                    preferred_element_type=jnp.float32)
    d_raw = d_raw + b_ref[3]                                  # cols 0..16 valid

    # ---- head (f32): sigmoid on lanes [0,11), softmax over lanes [11,17) ----
    # Single EUP exp pass serves both: sigmoid lanes carry exp(-z), softmax
    # lanes carry exp(z - m), all other lanes underflow to exactly 0.
    col = lax.broadcasted_iota(jnp.int32, d_raw.shape, 1)
    mask_sig = col < 11
    mask_sm = jnp.logical_and(col >= 11, col < 17)
    neg_big = jnp.float32(-1e30)

    m = jnp.max(jnp.where(mask_sm, d_raw, neg_big), axis=1, keepdims=True)
    e = jnp.exp(jnp.where(mask_sig, -d_raw,
                          jnp.where(mask_sm, d_raw - m, neg_big)))
    s = jnp.sum(jnp.where(mask_sm, e, 0.0), axis=1, keepdims=True)  # (tn, 1)
    inv_s = 1.0 / s                                     # exact recip on column
    sig = 1.0 / (1.0 + e)                               # valid on sigmoid lanes
    sm = e * inv_s                                      # softmax lanes; 0 for >=17
    d = jnp.where(mask_sig, sig, sm)                    # exactly 0 for col >= 17

    # ---- forward design network: 3x (Linear + ReLU) + Linear (bf16 MXU) ----
    h = d
    for l in range(4, 7):
        h = jnp.dot(h.astype(jnp.bfloat16), w_ref[l],
                    preferred_element_type=jnp.float32)
        h = jnp.maximum(h + b_ref[l], 0.0)
    p = jnp.dot(h.astype(jnp.bfloat16), w_ref[7],
                preferred_element_type=jnp.float32)
    p = p + b_ref[7]                                    # packed: lanes 17..27

    # d occupies lanes [0,17), p occupies lanes [17,28); everything else is 0.
    out_ref[...] = (d + p)[:, :OUT_W].astype(out_ref.dtype)


@jax.jit
def tnn_forward(x, w_stack, b_stack):
    """x: (N, 11) float32 -> (outputs_d (N, 17), outputs_p (N, 11))."""
    n = x.shape[0]
    tn, n_pad = _choose_tile(n)

    # pad only the batch axis; the 11-lane feature axis stays narrow in HBM
    x_pad = jnp.pad(x.astype(jnp.float32), ((0, n_pad - n), (0, 0)))

    grid = (n_pad // tn,)
    out = pl.pallas_call(
        tnn_kernel,
        out_shape=jax.ShapeDtypeStruct((n_pad, OUT_W), jnp.float32),
        grid_spec=pltpu.PrefetchScalarGridSpec(
            num_scalar_prefetch=0,
            grid=grid,
            in_specs=[
                pl.BlockSpec((tn, 11), lambda i: (i, 0)),
                # constant block index -> weights/biases DMA'd once, stay resident
                pl.BlockSpec((8, FPAD, FPAD), lambda i: (0, 0, 0)),
                pl.BlockSpec((8, 1, FPAD), lambda i: (0, 0, 0)),
            ],
            out_specs=pl.BlockSpec((tn, OUT_W), lambda i: (i, 0)),
            scratch_shapes=[pltpu.VMEM((tn, FPAD), jnp.float32)],
        ),
        compiler_params=pltpu.CompilerParams(
            dimension_semantics=("parallel",),
            vmem_limit_bytes=32 * 1024 * 1024,
        ),
    )(x_pad, w_stack, b_stack)

    outputs_d = out[:n, :17]
    outputs_p = out[:n, P_OFF:P_OFF + 11]
    return outputs_d, outputs_p


def init_params(key):
    """Deterministic parameter init; returns padded, stacked weights/biases.

    Weights are returned in bfloat16 (MXU operands); biases stay float32.
    Layer 7 (final forward-net Linear) is packed so its 11 output columns land
    in lanes [P_OFF, P_OFF+11) of the padded 128-wide feature axis.
    """
    ws, bs = [], []
    for (fan_in, fan_out) in ALL_DIMS:
        key, kw, kb = jax.random.split(key, 3)
        bound = 1.0 / (float(fan_in) ** 0.5)
        w = jax.random.uniform(kw, (fan_in, fan_out), jnp.float32, -bound, bound)
        b = jax.random.uniform(kb, (fan_out,), jnp.float32, -bound, bound)
        ws.append(w)
        bs.append(b)

    w_stack = jnp.zeros((8, FPAD, FPAD), jnp.float32)
    b_stack = jnp.zeros((8, 1, FPAD), jnp.float32)
    for l, ((fan_in, fan_out), w, b) in enumerate(zip(ALL_DIMS, ws, bs)):
        off = P_OFF if l == 7 else 0
        w_stack = w_stack.at[l, :fan_in, off:off + fan_out].set(w)
        b_stack = b_stack.at[l, 0, off:off + fan_out].set(b)
    return w_stack.astype(jnp.bfloat16), b_stack, ws, bs


def reference_forward(x, ws, bs):
    """Plain-JAX f32 reference for correctness checking."""
    h = x
    for l in range(3):
        h = jnp.maximum(h @ ws[l] + bs[l], 0.0)
    d_raw = h @ ws[3] + bs[3]
    d = jnp.concatenate(
        [jax.nn.sigmoid(d_raw[:, :11]), jax.nn.softmax(d_raw[:, 11:], axis=1)],
        axis=1)
    h = d
    for l in range(4, 7):
        h = jnp.maximum(h @ ws[l] + bs[l], 0.0)
    p = h @ ws[7] + bs[7]
    return d, p


if __name__ == "__main__":
    key = jax.random.PRNGKey(0)
    kparam, kx1, kx2, kx3 = jax.random.split(key, 4)

    w_stack, b_stack, ws, bs = init_params(kparam)

    # bf16 MXU operands -> compare against the f32 reference with ~1e-2 tolerance
    ATOL = 2e-2
    RTOL = 2e-2

    # small single-tile, mid single-tile, and multi-tile (grid > 1) batches
    for n, kx in ((8, kx1), (48, kx2), (2500, kx3)):
        x = jax.random.normal(kx, (n, 11), jnp.float32)
        d, p = tnn_forward(x, w_stack, b_stack)
        jax.block_until_ready((d, p))
        rd, rp = reference_forward(x, ws, bs)
        assert d.shape == (n, 17) and p.shape == (n, 11)
        assert jnp.allclose(d, rd, atol=ATOL, rtol=RTOL), (
            f"outputs_d mismatch at N={n}: max abs err {jnp.max(jnp.abs(d - rd))}")
        assert jnp.allclose(p, rp, atol=ATOL, rtol=RTOL), (
            f"outputs_p mismatch at N={n}: max abs err {jnp.max(jnp.abs(p - rp))}")

    print("KERNEL_OK")
</pallas_src>

<mosaic_0001>
module attributes {stable_mosaic.version = 11 : i64} {
  func.func @tnn_kernel(%arg0: i32, %arg1: memref<8x11xf32, #tpu.memory_space<vmem>>, %arg2: memref<8x128x128xbf16, #tpu.memory_space<vmem>>, %arg3: memref<8x1x128xf32, #tpu.memory_space<vmem>>, %arg4: memref<8x32xf32, #tpu.memory_space<vmem>>, %arg5: memref<8x128xf32, #tpu.memory_space<vmem>>) attributes {dimension_semantics = [#tpu.dimension_semantics<parallel>], iteration_bounds = array<i64: 1>, scalar_prefetch = 0 : i64, scratch_operands = 1 : i64, tpu.core_type = #tpu.core_type<tc>, window_params = [{transform_indices = @transform_0, window_bounds = array<i64: 8, 11>}, {pipeline_mode = #tpu.pipeline_mode<synchronous>, transform_indices = @transform_1, window_bounds = array<i64: 8, 128, 128>}, {pipeline_mode = #tpu.pipeline_mode<synchronous>, transform_indices = @transform_2, window_bounds = array<i64: 8, 1, 128>}, {transform_indices = @transform_3, window_bounds = array<i64: 8, 32>}]} {
    %cst = arith.constant 0.000000e+00 : f32
    %0 = vector.broadcast %cst : f32 to vector<8x128xf32>
    %c0 = arith.constant 0 : index
    %c0_0 = arith.constant 0 : index
    %1 = vector.load %arg5[%c0, %c0_0] : memref<8x128xf32, #tpu.memory_space<vmem>>, vector<8x128xf32>
    tpu.vector_store %arg5[%c0, %c0_0], %0 {strides = array<i32>} : memref<8x128xf32, #tpu.memory_space<vmem>>, vector<8x128xf32>,
    %c0_1 = arith.constant 0 : index
    %c0_2 = arith.constant 0 : index
    %2 = vector.load %arg1[%c0_1, %c0_2] : memref<8x11xf32, #tpu.memory_space<vmem>>, vector<8x11xf32>
    %c0_3 = arith.constant 0 : index
    %c0_4 = arith.constant 0 : index
    %3 = vector.load %arg5[%c0_3, %c0_4] : memref<8x128xf32, #tpu.memory_space<vmem>>, vector<8x11xf32>
    tpu.vector_store %arg5[%c0_3, %c0_4], %2 {strides = array<i32>} : memref<8x128xf32, #tpu.memory_space<vmem>>, vector<8x11xf32>,
    %c0_5 = arith.constant 0 : index
    %c0_6 = arith.constant 0 : index
    %4 = vector.load %arg5[%c0_5, %c0_6] : memref<8x128xf32, #tpu.memory_space<vmem>>, vector<8x128xf32>
    %5 = arith.truncf %4 : vector<8x128xf32> to vector<8x128xbf16>
    %c0_7 = arith.constant 0 : index
    %c0_8 = arith.constant 0 : index
    %c0_9 = arith.constant 0 : index
    %6 = vector.load %arg2[%c0_7, %c0_8, %c0_9] : memref<8x128x128xbf16, #tpu.memory_space<vmem>>, vector<1x128x128xbf16>
    %7 = vector.shape_cast %6 : vector<1x128x128xbf16> to vector<128x128xbf16>
    %cst_10 = arith.constant dense<0.000000e+00> : vector<8x128xf32>
    %8 = tpu.matmul %5, %7, %cst_10 {dimension_numbers = #tpu.dot_dimension_numbers<[1], [0], [0], [1], [0, 0, 1, 1], [], []>} : vector<8x128xbf16>, vector<128x128xbf16>, vector<8x128xf32> -> vector<8x128xf32>
    %c0_11 = arith.constant 0 : index
    %c0_12 = arith.constant 0 : index
    %c0_13 = arith.constant 0 : index
    %9 = vector.load %arg3[%c0_11, %c0_12, %c0_13] : memref<8x1x128xf32, #tpu.memory_space<vmem>>, vector<1x1x128xf32>
    %10 = vector.shape_cast %9 : vector<1x1x128xf32> to vector<1x128xf32>
    %11 = vector.broadcast %10 : vector<1x128xf32> to vector<8x128xf32>
    %12 = arith.addf %8, %11 : vector<8x128xf32>
    %cst_14 = arith.constant 0.000000e+00 : f32
    %13 = vector.broadcast %cst_14 : f32 to vector<8x128xf32>
    %14 = arith.maximumf %12, %13 : vector<8x128xf32>
    %15 = arith.truncf %14 : vector<8x128xf32> to vector<8x128xbf16>
    %c1 = arith.constant 1 : index
    %c0_15 = arith.constant 0 : index
    %c0_16 = arith.constant 0 : index
    %16 = vector.load %arg2[%c1, %c0_15, %c0_16] : memref<8x128x128xbf16, #tpu.memory_space<vmem>>, vector<1x128x128xbf16>
    %17 = vector.shape_cast %16 : vector<1x128x128xbf16> to vector<128x128xbf16>
    %cst_17 = arith.constant dense<0.000000e+00> : vector<8x128xf32>
    %18 = tpu.matmul %15, %17, %cst_17 {dimension_numbers = #tpu.dot_dimension_numbers<[1], [0], [0], [1], [0, 0, 1, 1], [], []>} : vector<8x128xbf16>, vector<128x128xbf16>, vector<8x128xf32> -> vector<8x128xf32>
    %c1_18 = arith.constant 1 : index
    %c0_19 = arith.constant 0 : index
    %c0_20 = arith.constant 0 : index
    %19 = vector.load %arg3[%c1_18, %c0_19, %c0_20] : memref<8x1x128xf32, #tpu.memory_space<vmem>>, vector<1x1x128xf32>
    %20 = vector.shape_cast %19 : vector<1x1x128xf32> to vector<1x128xf32>
    %21 = vector.broadcast %20 : vector<1x128xf32> to vector<8x128xf32>
    %22 = arith.addf %18, %21 : vector<8x128xf32>
    %cst_21 = arith.constant 0.000000e+00 : f32
    %23 = vector.broadcast %cst_21 : f32 to vector<8x128xf32>
    %24 = arith.maximumf %22, %23 : vector<8x128xf32>
    %25 = arith.truncf %24 : vector<8x128xf32> to vector<8x128xbf16>
    %c2 = arith.constant 2 : index
    %c0_22 = arith.constant 0 : index
    %c0_23 = arith.constant 0 : index
    %26 = vector.load %arg2[%c2, %c0_22, %c0_23] : memref<8x128x128xbf16, #tpu.memory_space<vmem>>, vector<1x128x128xbf16>
    %27 = vector.shape_cast %26 : vector<1x128x128xbf16> to vector<128x128xbf16>
    %cst_24 = arith.constant dense<0.000000e+00> : vector<8x128xf32>
    %28 = tpu.matmul %25, %27, %cst_24 {dimension_numbers = #tpu.dot_dimension_numbers<[1], [0], [0], [1], [0, 0, 1, 1], [], []>} : vector<8x128xbf16>, vector<128x128xbf16>, vector<8x128xf32> -> vector<8x128xf32>
    %c2_25 = arith.constant 2 : index
    %c0_26 = arith.constant 0 : index
    %c0_27 = arith.constant 0 : index
    %29 = vector.load %arg3[%c2_25, %c0_26, %c0_27] : memref<8x1x128xf32, #tpu.memory_space<vmem>>, vector<1x1x128xf32>
    %30 = vector.shape_cast %29 : vector<1x1x128xf32> to vector<1x128xf32>
    %31 = vector.broadcast %30 : vector<1x128xf32> to vector<8x128xf32>
    %32 = arith.addf %28, %31 : vector<8x128xf32>
    %cst_28 = arith.constant 0.000000e+00 : f32
    %33 = vector.broadcast %cst_28 : f32 to vector<8x128xf32>
    %34 = arith.maximumf %32, %33 : vector<8x128xf32>
    %35 = arith.truncf %34 : vector<8x128xf32> to vector<8x128xbf16>
    %c3 = arith.constant 3 : index
    %c0_29 = arith.constant 0 : index
    %c0_30 = arith.constant 0 : index
    %36 = vector.load %arg2[%c3, %c0_29, %c0_30] : memref<8x128x128xbf16, #tpu.memory_space<vmem>>, vector<1x128x128xbf16>
    %37 = vector.shape_cast %36 : vector<1x128x128xbf16> to vector<128x128xbf16>
    %cst_31 = arith.constant dense<0.000000e+00> : vector<8x128xf32>
    %38 = tpu.matmul %35, %37, %cst_31 {dimension_numbers = #tpu.dot_dimension_numbers<[1], [0], [0], [1], [0, 0, 1, 1], [], []>} : vector<8x128xbf16>, vector<128x128xbf16>, vector<8x128xf32> -> vector<8x128xf32>
    %c3_32 = arith.constant 3 : index
    %c0_33 = arith.constant 0 : index
    %c0_34 = arith.constant 0 : index
    %39 = vector.load %arg3[%c3_32, %c0_33, %c0_34] : memref<8x1x128xf32, #tpu.memory_space<vmem>>, vector<1x1x128xf32>
    %40 = vector.shape_cast %39 : vector<1x1x128xf32> to vector<1x128xf32>
    %41 = vector.broadcast %40 : vector<1x128xf32> to vector<8x128xf32>
    %42 = arith.addf %38, %41 : vector<8x128xf32>
    %43 = tpu.iota {dimensions = array<i32: 1>} : vector<8x128xi32>
    %c11_i32 = arith.constant 11 : i32
    %44 = vector.broadcast %c11_i32 : i32 to vector<8x128xi32>
    %45 = arith.cmpi slt, %43, %44 : vector<8x128xi32>
    %c11_i32_35 = arith.constant 11 : i32
    %46 = vector.broadcast %c11_i32_35 : i32 to vector<8x128xi32>
    %47 = arith.cmpi sge, %43, %46 : vector<8x128xi32>
    %c17_i32 = arith.constant 17 : i32
    %48 = vector.broadcast %c17_i32 : i32 to vector<8x128xi32>
    %49 = arith.cmpi slt, %43, %48 : vector<8x128xi32>
    %50 = arith.andi %47, %49 : vector<8x128xi1>
    %cst_36 = arith.constant -1.000000e+30 : f32
    %51 = vector.broadcast %cst_36 : f32 to vector<8x128xf32>
    %52 = arith.select %50, %42, %51 : vector<8x128xi1>, vector<8x128xf32>
    %cst_37 = arith.constant dense<0xFF800000> : vector<8xf32>
    %53 = vector.multi_reduction <maximumf>, %52, %cst_37 [1] : vector<8x128xf32> to vector<8xf32>
    %54 = vector.shape_cast %53 : vector<8xf32> to vector<8x1xf32>
    %cst_38 = arith.constant 0.000000e+00 : f32
    %55 = vector.broadcast %cst_38 : f32 to vector<8x128xf32>
    %56 = arith.subf %55, %42 : vector<8x128xf32>
    %57 = vector.broadcast %54 : vector<8x1xf32> to vector<8x128xf32>
    %58 = arith.subf %42, %57 : vector<8x128xf32>
    %cst_39 = arith.constant -1.000000e+30 : f32
    %59 = vector.broadcast %cst_39 : f32 to vector<8x128xf32>
    %60 = arith.select %50, %58, %59 : vector<8x128xi1>, vector<8x128xf32>
    %61 = arith.select %45, %56, %60 : vector<8x128xi1>, vector<8x128xf32>
    %62 = math.exp %61 : vector<8x128xf32>
    %cst_40 = arith.constant 0.000000e+00 : f32
    %63 = vector.broadcast %cst_40 : f32 to vector<8x128xf32>
    %64 = arith.select %50, %62, %63 : vector<8x128xi1>, vector<8x128xf32>
    %cst_41 = arith.constant dense<0.000000e+00> : vector<8xf32>
    %65 = vector.multi_reduction <add>, %64, %cst_41 [1] : vector<8x128xf32> to vector<8xf32>
    %66 = vector.shape_cast %65 : vector<8xf32> to vector<8x1xf32>
    %cst_42 = arith.constant 1.000000e+00 : f32
    %67 = vector.broadcast %cst_42 : f32 to vector<8x1xf32>
    %68 = arith.divf %67, %66 : vector<8x1xf32>
    %cst_43 = arith.constant 1.000000e+00 : f32
    %69 = vector.broadcast %cst_43 : f32 to vector<8x128xf32>
    %70 = arith.addf %69, %62 : vector<8x128xf32>
    %cst_44 = arith.constant 1.000000e+00 : f32
    %71 = vector.broadcast %cst_44 : f32 to vector<8x128xf32>
    %72 = arith.divf %71, %70 : vector<8x128xf32>
    %73 = vector.broadcast %68 : vector<8x1xf32> to vector<8x128xf32>
    %74 = arith.mulf %62, %73 : vector<8x128xf32>
    %75 = arith.select %45, %72, %74 : vector<8x128xi1>, vector<8x128xf32>
    %76 = arith.truncf %75 : vector<8x128xf32> to vector<8x128xbf16>
    %c4 = arith.constant 4 : index
    %c0_45 = arith.constant 0 : index
    %c0_46 = arith.constant 0 : index
    %77 = vector.load %arg2[%c4, %c0_45, %c0_46] : memref<8x128x128xbf16, #tpu.memory_space<vmem>>, vector<1x128x128xbf16>
    %78 = vector.shape_cast %77 : vector<1x128x128xbf16> to vector<128x128xbf16>
    %cst_47 = arith.constant dense<0.000000e+00> : vector<8x128xf32>
    %79 = tpu.matmul %76, %78, %cst_47 {dimension_numbers = #tpu.dot_dimension_numbers<[1], [0], [0], [1], [0, 0, 1, 1], [], []>} : vector<8x128xbf16>, vector<128x128xbf16>, vector<8x128xf32> -> vector<8x128xf32>
    %c4_48 = arith.constant 4 : index
    %c0_49 = arith.constant 0 : index
    %c0_50 = arith.constant 0 : index
    %80 = vector.load %arg3[%c4_48, %c0_49, %c0_50] : memref<8x1x128xf32, #tpu.memory_space<vmem>>, vector<1x1x128xf32>
    %81 = vector.shape_cast %80 : vector<1x1x128xf32> to vector<1x128xf32>
    %82 = vector.broadcast %81 : vector<1x128xf32> to vector<8x128xf32>
    %83 = arith.addf %79, %82 : vector<8x128xf32>
    %cst_51 = arith.constant 0.000000e+00 : f32
    %84 = vector.broadcast %cst_51 : f32 to vector<8x128xf32>
    %85 = arith.maximumf %83, %84 : vector<8x128xf32>
    %86 = arith.truncf %85 : vector<8x128xf32> to vector<8x128xbf16>
    %c5 = arith.constant 5 : index
    %c0_52 = arith.constant 0 : index
    %c0_53 = arith.constant 0 : index
    %87 = vector.load %arg2[%c5, %c0_52, %c0_53] : memref<8x128x128xbf16, #tpu.memory_space<vmem>>, vector<1x128x128xbf16>
    %88 = vector.shape_cast %87 : vector<1x128x128xbf16> to vector<128x128xbf16>
    %cst_54 = arith.constant dense<0.000000e+00> : vector<8x128xf32>
    %89 = tpu.matmul %86, %88, %cst_54 {dimension_numbers = #tpu.dot_dimension_numbers<[1], [0], [0], [1], [0, 0, 1, 1], [], []>} : vector<8x128xbf16>, vector<128x128xbf16>, vector<8x128xf32> -> vector<8x128xf32>
    %c5_55 = arith.constant 5 : index
    %c0_56 = arith.constant 0 : index
    %c0_57 = arith.constant 0 : index
    %90 = vector.load %arg3[%c5_55, %c0_56, %c0_57] : memref<8x1x128xf32, #tpu.memory_space<vmem>>, vector<1x1x128xf32>
    %91 = vector.shape_cast %90 : vector<1x1x128xf32> to vector<1x128xf32>
    %92 = vector.broadcast %91 : vector<1x128xf32> to vector<8x128xf32>
    %93 = arith.addf %89, %92 : vector<8x128xf32>
    %cst_58 = arith.constant 0.000000e+00 : f32
    %94 = vector.broadcast %cst_58 : f32 to vector<8x128xf32>
    %95 = arith.maximumf %93, %94 : vector<8x128xf32>
    %96 = arith.truncf %95 : vector<8x128xf32> to vector<8x128xbf16>
    %c6 = arith.constant 6 : index
    %c0_59 = arith.constant 0 : index
    %c0_60 = arith.constant 0 : index
    %97 = vector.load %arg2[%c6, %c0_59, %c0_60] : memref<8x128x128xbf16, #tpu.memory_space<vmem>>, vector<1x128x128xbf16>
    %98 = vector.shape_cast %97 : vector<1x128x128xbf16> to vector<128x128xbf16>
    %cst_61 = arith.constant dense<0.000000e+00> : vector<8x128xf32>
    %99 = tpu.matmul %96, %98, %cst_61 {dimension_numbers = #tpu.dot_dimension_numbers<[1], [0], [0], [1], [0, 0, 1, 1], [], []>} : vector<8x128xbf16>, vector<128x128xbf16>, vector<8x128xf32> -> vector<8x128xf32>
    %c6_62 = arith.constant 6 : index
    %c0_63 = arith.constant 0 : index
    %c0_64 = arith.constant 0 : index
    %100 = vector.load %arg3[%c6_62, %c0_63, %c0_64] : memref<8x1x128xf32, #tpu.memory_space<vmem>>, vector<1x1x128xf32>
    %101 = vector.shape_cast %100 : vector<1x1x128xf32> to vector<1x128xf32>
    %102 = vector.broadcast %101 : vector<1x128xf32> to vector<8x128xf32>
    %103 = arith.addf %99, %102 : vector<8x128xf32>
    %cst_65 = arith.constant 0.000000e+00 : f32
    %104 = vector.broadcast %cst_65 : f32 to vector<8x128xf32>
    %105 = arith.maximumf %103, %104 : vector<8x128xf32>
    %106 = arith.truncf %105 : vector<8x128xf32> to vector<8x128xbf16>
    %c7 = arith.constant 7 : index
    %c0_66 = arith.constant 0 : index
    %c0_67 = arith.constant 0 : index
    %107 = vector.load %arg2[%c7, %c0_66, %c0_67] : memref<8x128x128xbf16, #tpu.memory_space<vmem>>, vector<1x128x128xbf16>
    %108 = vector.shape_cast %107 : vector<1x128x128xbf16> to vector<128x128xbf16>
    %cst_68 = arith.constant dense<0.000000e+00> : vector<8x128xf32>
    %109 = tpu.matmul %106, %108, %cst_68 {dimension_numbers = #tpu.dot_dimension_numbers<[1], [0], [0], [1], [0, 0, 1, 1], [], []>} : vector<8x128xbf16>, vector<128x128xbf16>, vector<8x128xf32> -> vector<8x128xf32>
    %c7_69 = arith.constant 7 : index
    %c0_70 = arith.constant 0 : index
    %c0_71 = arith.constant 0 : index
    %110 = vector.load %arg3[%c7_69, %c0_70, %c0_71] : memref<8x1x128xf32, #tpu.memory_space<vmem>>, vector<1x1x128xf32>
    %111 = vector.shape_cast %110 : vector<1x1x128xf32> to vector<1x128xf32>
    %112 = vector.broadcast %111 : vector<1x128xf32> to vector<8x128xf32>
    %113 = arith.addf %109, %112 : vector<8x128xf32>
    %114 = arith.addf %75, %113 : vector<8x128xf32>
    %115 = vector.extract_strided_slice %114 {offsets = [0, 0], sizes = [8, 32], strides = [1, 1]} : vector<8x128xf32> to vector<8x32xf32>
    %c0_72 = arith.constant 0 : index
    %c0_73 = arith.constant 0 : index
    %116 = vector.load %arg4[%c0_72, %c0_73] : memref<8x32xf32, #tpu.memory_space<vmem>>, vector<8x32xf32>
    tpu.vector_store %arg4[%c0_72, %c0_73], %115 {strides = array<i32>} : memref<8x32xf32, #tpu.memory_space<vmem>>, vector<8x32xf32>,
    return
  }
  func.func @transform_0(%arg0: i32) -> (i32, i32) {
    %c0_i32 = arith.constant 0 : i32
    %c0_i32_0 = arith.constant 0 : i32
    return %arg0, %c0_i32 : i32, i32
  }
  func.func @transform_1(%arg0: i32) -> (i32, i32, i32) {
    %c0_i32 = arith.constant 0 : i32
    %c0_i32_0 = arith.constant 0 : i32
    %c0_i32_1 = arith.constant 0 : i32
    %c0_i32_2 = arith.constant 0 : i32
    return %c0_i32, %c0_i32_0, %c0_i32_1 : i32, i32, i32
  }
  func.func @transform_2(%arg0: i32) -> (i32, i32, i32) {
    %c0_i32 = arith.constant 0 : i32
    %c0_i32_0 = arith.constant 0 : i32
    %c0_i32_1 = arith.constant 0 : i32
    %c0_i32_2 = arith.constant 0 : i32
    return %c0_i32, %c0_i32_0, %c0_i32_1 : i32, i32, i32
  }
  func.func @transform_3(%arg0: i32) -> (i32, i32) {
    %c0_i32 = arith.constant 0 : i32
    %c0_i32_0 = arith.constant 0 : i32
    return %arg0, %c0_i32 : i32, i32
  }
}

</mosaic_0001>

<llo_original>
// kernel: tnn_forward.1
$region0: #{tnn_forward.1}
  #allocation0 [shape = 'u32[]', space=smem, size = 0x4, offset = 0x4, fixed_abs, tag = 'smem constant byte address 0x4 - core index']
  #allocation1 [shape = 'u32[144,128]{1,0:T(1,128)}', space=vmem, size = 0x12000, scoped, tag = 'internal scratch']
  #allocation2 [shape = 'f32[8,128]{1,0:T(8,128)}', space=vmem, size = 0x1000, scoped, tag = 'scratch operand']
  %s0 = inlined_call_operand.hbm [shape: f32[8,11], index: 0, kind: input, shape index: {}]
  %s1 = inlined_call_operand.hbm [shape: bf16[8,128,128], index: 1, kind: input, shape index: {}]
  %s2 = inlined_call_operand.hbm [shape: f32[8,1,128], index: 2, kind: input, shape index: {}]
  %s3 = inlined_call_operand.vmem [shape: f32[8,32], index: 3, kind: output, shape index: {}]
  %s4 = sld [smem:[#allocation0]]
  $region34: #{tnn_forward.1} parent=0
    _
  %s6 = ssub.s32 1, %s4
  %s7 = scalar_select 0, %s6, %s4
  $region1: #{tnn_forward.1} parent=0
    #allocation3 [shape = 'u8[4096]{0}', space=vmem, size = 0x1000, scoped, tag = 'input window, operand 0, single buffered']
    #allocation4 [shape = 's32[1]{0}', space=sflag, size = 0x4, scoped, tag = 'scoped memory for tnn_forward.1']
    #allocation5 [shape = 'u8[262144]{0}', space=vmem, size = 0x40000, scoped, tag = 'input window, operand 1, single buffered']
    #allocation6 [shape = 's32[1]{0}', space=sflag, size = 0x4, scoped, tag = 'scoped memory for tnn_forward.1']
    #allocation7 [shape = 'u8[4096]{0}', space=vmem, size = 0x1000, scoped, tag = 'input window, operand 2, single buffered']
    %8 = vsyncpa [#allocation4], 0
    %9 = vsyncpa [#allocation6], 0
    // Predicated region
    $region2: #{tnn_forward.1} parent=1 // pred_check
      _
    $region3: #{tnn_forward.1} parent=1 // pred_check_branch
      %11 = sbr.rel (0) target = $region5
    $region4: #{tnn_forward.1} parent=1 // pred_region
      %s13 = ssub.s32 128, 128
      %14 = vsyncadd [#allocation4], %s13
      %s16 = sshll.u32 [#allocation3], 4
      %s17 = int_to_ptr.vmem [resolvable:$true] %s16
      %19 = dma.hbm_to_vmem [thread:$0]  %s0, 128, %s17, [#allocation4]
    $region5: #{tnn_forward.1} parent=1 // pred_fallthru
      _
    // Predicated region
    $region6: #{tnn_forward.1} parent=1 // pred_check
      _
    $region7: #{tnn_forward.1} parent=1 // pred_check_branch
      %21 = sbr.rel (0) target = $region9
    $region8: #{tnn_forward.1} parent=1 // pred_region
      %s23 = ssub.s32 8192, 8192
      %24 = vsyncadd [#allocation6], %s23
      %s25 = sshll.u32 [#allocation5], 4
      %s26 = int_to_ptr.vmem [resolvable:$true] %s25
      %31 = dma.hbm_to_vmem [thread:$0]  %s1, 8192, %s26, [#allocation6], 64, 64, 4
    $region9: #{tnn_forward.1} parent=1 // pred_fallthru
      _
    // Predicated region
    $region10: #{tnn_forward.1} parent=1 // pred_check
      _
    $region11: #{tnn_forward.1} parent=1 // pred_check_branch
      %33 = sbr.rel (0) target = $region13
    $region12: #{tnn_forward.1} parent=1 // pred_region
      %s35 = ssub.s32 128, 128
      %36 = vsyncadd [#allocation6], %s35
      %s37 = sshll.u32 [#allocation7], 4
      %s38 = int_to_ptr.vmem [resolvable:$true] %s37
      %43 = dma.hbm_to_vmem [thread:$0]  %s2, 128, %s38, [#allocation6], 16, 16, 1
    $region13: #{tnn_forward.1} parent=1 // pred_fallthru
      _
    // Predicated region
    $region14: #{tnn_forward.1} parent=1 // pred_check
      _
    $region15: #{tnn_forward.1} parent=1 // pred_check_branch
      %45 = sbr.rel (0) target = $region17
    $region16: #{tnn_forward.1} parent=1 // pred_region
      %46 = dma.done [#allocation4], 128
    $region17: #{tnn_forward.1} parent=1 // pred_fallthru
      _
    // Predicated region
    $region18: #{tnn_forward.1} parent=1 // pred_check
      _
    $region19: #{tnn_forward.1} parent=1 // pred_check_branch
      %48 = sbr.rel (0) target = $region21
    $region20: #{tnn_forward.1} parent=1 // pred_region
      %49 = dma.done [#allocation6], 8192
    $region21: #{tnn_forward.1} parent=1 // pred_fallthru
      _
    // Predicated region
    $region22: #{tnn_forward.1} parent=1 // pred_check
      _
    $region23: #{tnn_forward.1} parent=1 // pred_check_branch
      %51 = sbr.rel (0) target = $region25
    $region24: #{tnn_forward.1} parent=1 // pred_region
      %52 = dma.done [#allocation6], 128
    $region25: #{tnn_forward.1} parent=1 // pred_fallthru
      _
    %54 = vst [vmem:[#allocation2] sm:$0xff] 0.0
    %v55 = vld [vmem:[#allocation3] sm:$0xff]
    %vm56 = vcmask 89088
    %57 = vst.msk [vmem:[#allocation2] sm:$0xff] %vm56, %v55
    %v58 = vld [vmem:[#allocation2] sm:$0xff]
    %v59 = vpack.c.bf16 %v58, %v58
    %v60 = vld [vmem:[#allocation5] sm:$0xf]
    %v61 = vld [vmem:[#allocation5 + $0x4] sm:$0xf]
    %v62 = vld [vmem:[#allocation5 + $0x8] sm:$0xf]
    %v63 = vld [vmem:[#allocation5 + $0xc] sm:$0xf]
    %v64 = vld [vmem:[#allocation5 + $0x10] sm:$0xf]
    %v65 = vld [vmem:[#allocation5 + $0x14] sm:$0xf]
    %v66 = vld [vmem:[#allocation5 + $0x18] sm:$0xf]
    %v67 = vld [vmem:[#allocation5 + $0x1c] sm:$0xf]
    %v68 = vld [vmem:[#allocation5 + $0x20] sm:$0xf]
    %v69 = vld [vmem:[#allocation5 + $0x24] sm:$0xf]
    %v70 = vld [vmem:[#allocation5 + $0x28] sm:$0xf]
    %v71 = vld [vmem:[#allocation5 + $0x2c] sm:$0xf]
    %v72 = vld [vmem:[#allocation5 + $0x30] sm:$0xf]
    %v73 = vld [vmem:[#allocation5 + $0x34] sm:$0xf]
    %v74 = vld [vmem:[#allocation5 + $0x38] sm:$0xf]
    %v75 = vld [vmem:[#allocation5 + $0x3c] sm:$0xf]
    %v76 = vld [vmem:[#allocation7] sm:$0x1]
    %v78 = vlaneseq
    %v79 = vshrl.u32 %v78, 7
    %v80 = vsub.s32 0, %v79
    %v81 = vrot.slane %v76, %v80
    %v99 = vunpack.c.l.b16 %v60
    %v100 = vunpack.c.l.b16 %v61
    %v101 = vunpack.c.l.b16 %v62
    %v102 = vunpack.c.l.b16 %v63
    %v103 = vunpack.c.l.b16 %v64
    %v104 = vunpack.c.l.b16 %v65
    %v105 = vunpack.c.l.b16 %v66
    %v106 = vunpack.c.l.b16 %v67
    %v107 = vunpack.c.l.b16 %v68
    %v108 = vunpack.c.l.b16 %v69
    %v109 = vunpack.c.l.b16 %v70
    %v110 = vunpack.c.l.b16 %v71
    %v111 = vunpack.c.l.b16 %v72
    %v112 = vunpack.c.l.b16 %v73
    %v113 = vunpack.c.l.b16 %v74
    %v114 = vunpack.c.l.b16 %v75
    %v115 = vpack.c.b16 %v100, %v99
    %v116 = vpack.c.b16 %v102, %v101
    %v117 = vpack.c.b16 %v104, %v103
    %v118 = vpack.c.b16 %v106, %v105
    %v119 = vpack.c.b16 %v108, %v107
    %v120 = vpack.c.b16 %v110, %v109
    %v121 = vpack.c.b16 %v112, %v111
    %v122 = vpack.c.b16 %v114, %v113
    %131 = vmatprep.subr.bf16.mxu0 0
    %132 = vmatpush1.bf16.msra.mxu0 %v122
    %133 = vmatprep.subr.bf16.mxu0 0
    %134 = vmatpush1.bf16.msra.mxu0 %v121
    %135 = vmatprep.subr.bf16.mxu0 0
    %136 = vmatpush1.bf16.msra.mxu0 %v120
    %137 = vmatprep.subr.bf16.mxu0 0
    %138 = vmatpush1.bf16.msra.mxu0 %v119
    %139 = vmatprep.subr.bf16.mxu0 0
    %140 = vmatpush1.bf16.msra.mxu0 %v118
    %141 = vmatprep.subr.bf16.mxu0 0
    %142 = vmatpush1.bf16.msra.mxu0 %v117
    %143 = vmatprep.subr.bf16.mxu0 0
    %144 = vmatpush1.bf16.msra.mxu0 %v116
    %145 = vmatprep.subr.bf16.mxu0 0
    %146 = vmatpush1.bf16.msra.mxu0 %v115
    %147 = vmatprep.subr.bf16.mxu0 0
    %148 = vmatpush2.bf16.msra.mxu0 0
    %149 = vmatprep.subr.bf16.mxu0 0
    %150 = vmatpush2.bf16.msra.mxu0 0
    %151 = vmatprep.subr.bf16.mxu0 0
    %152 = vmatpush2.bf16.msra.mxu0 0
    %153 = vmatprep.subr.bf16.mxu0 0
    %154 = vmatpush2.bf16.msra.mxu0 0
    %155 = vmatprep.subr.bf16.mxu0 0
    %156 = vmatpush2.bf16.msra.mxu0 0
    %157 = vmatprep.subr.bf16.mxu0 0
    %158 = vmatpush2.bf16.msra.mxu0 0
    %159 = vmatprep.subr.bf16.mxu0 0
    %160 = vmatpush2.bf16.msra.mxu0 0
    %161 = vmatprep.subr.bf16.mxu0 0
    %162 = vmatpush2.bf16.msra.mxu0 0
    %163 = vmatprep.mubr.bf16.mxu0 0
    %164 = vmatmul.mubr.bf16.gmra.mxu0 %v59
    %v165 = vpop.f32.mrf.mxu0
    %v166 = vadd.f32 %v81, %v165
    %v167 = vpop.f32.mrf.mxu0
    %v168 = vpop.f32.mrf.mxu0
    %v169 = vpop.f32.mrf.mxu0
    %170 = vdwg.mxu0
    %v171 = vmax.f32 %v166, 0.0
    %v172 = vpack.c.bf16 %v171, %v171
    %s173 = scalar_lea.vmem [#allocation5], 64
    %v174 = vld [vmem:[%s173] sm:$0xf]
    %v175 = vld [vmem:[%s173 + $0x4] sm:$0xf]
    %v176 = vld [vmem:[%s173 + $0x8] sm:$0xf]
    %v177 = vld [vmem:[%s173 + $0xc] sm:$0xf]
    %v178 = vld [vmem:[%s173 + $0x10] sm:$0xf]
    %v179 = vld [vmem:[%s173 + $0x14] sm:$0xf]
    %v180 = vld [vmem:[%s173 + $0x18] sm:$0xf]
    %v181 = vld [vmem:[%s173 + $0x1c] sm:$0xf]
    %v182 = vld [vmem:[%s173 + $0x20] sm:$0xf]
    %v183 = vld [vmem:[%s173 + $0x24] sm:$0xf]
    %v184 = vld [vmem:[%s173 + $0x28] sm:$0xf]
    %v185 = vld [vmem:[%s173 + $0x2c] sm:$0xf]
    %v186 = vld [vmem:[%s173 + $0x30] sm:$0xf]
    %v187 = vld [vmem:[%s173 + $0x34] sm:$0xf]
    %v188 = vld [vmem:[%s173 + $0x38] sm:$0xf]
    %v189 = vld [vmem:[%s173 + $0x3c] sm:$0xf]
    %s190 = scalar_lea.vmem [#allocation7], 1
    %v191 = vld [vmem:[%s190] sm:$0x1]
    %v193 = vlaneseq
    %v194 = vshrl.u32 %v193, 7
    %v195 = vsub.s32 0, %v194
    %v196 = vrot.slane %v191, %v195
    %v214 = vunpack.c.l.b16 %v174
    %v215 = vunpack.c.l.b16 %v175
    %v216 = vunpack.c.l.b16 %v176
    %v217 = vunpack.c.l.b16 %v177
    %v218 = vunpack.c.l.b16 %v178
    %v219 = vunpack.c.l.b16 %v179
    %v220 = vunpack.c.l.b16 %v180
    %v221 = vunpack.c.l.b16 %v181
    %v222 = vunpack.c.l.b16 %v182
    %v223 = vunpack.c.l.b16 %v183
    %v224 = vunpack.c.l.b16 %v184
    %v225 = vunpack.c.l.b16 %v185
    %v226 = vunpack.c.l.b16 %v186
    %v227 = vunpack.c.l.b16 %v187
    %v228 = vunpack.c.l.b16 %v188
    %v229 = vunpack.c.l.b16 %v189
    %v230 = vpack.c.b16 %v215, %v214
    %v231 = vpack.c.b16 %v217, %v216
    %v232 = vpack.c.b16 %v219, %v218
    %v233 = vpack.c.b16 %v221, %v220
    %v234 = vpack.c.b16 %v223, %v222
    %v235 = vpack.c.b16 %v225, %v224
    %v236 = vpack.c.b16 %v227, %v226
    %v237 = vpack.c.b16 %v229, %v228
    %246 = vmatprep.subr.bf16.mxu0 0
    %247 = vmatpush1.bf16.msra.mxu0 %v237
    %248 = vmatprep.subr.bf16.mxu0 0
    %249 = vmatpush1.bf16.msra.mxu0 %v236
    %250 = vmatprep.subr.bf16.mxu0 0
    %251 = vmatpush1.bf16.msra.mxu0 %v235
    %252 = vmatprep.subr.bf16.mxu0 0
    %253 = vmatpush1.bf16.msra.mxu0 %v234
    %254 = vmatprep.subr.bf16.mxu0 0
    %255 = vmatpush1.bf16.msra.mxu0 %v233
    %256 = vmatprep.subr.bf16.mxu0 0
    %257 = vmatpush1.bf16.msra.mxu0 %v232
    %258 = vmatprep.subr.bf16.mxu0 0
    %259 = vmatpush1.bf16.msra.mxu0 %v231
    %260 = vmatprep.subr.bf16.mxu0 0
    %261 = vmatpush1.bf16.msra.mxu0 %v230
    %262 = vmatprep.subr.bf16.mxu0 0
    %263 = vmatpush2.bf16.msra.mxu0 0
    %264 = vmatprep.subr.bf16.mxu0 0
    %265 = vmatpush2.bf16.msra.mxu0 0
    %266 = vmatprep.subr.bf16.mxu0 0
    %267 = vmatpush2.bf16.msra.mxu0 0
    %268 = vmatprep.subr.bf16.mxu0 0
    %269 = vmatpush2.bf16.msra.mxu0 0
    %270 = vmatprep.subr.bf16.mxu0 0
    %271 = vmatpush2.bf16.msra.mxu0 0
    %272 = vmatprep.subr.bf16.mxu0 0
    %273 = vmatpush2.bf16.msra.mxu0 0
    %274 = vmatprep.subr.bf16.mxu0 0
    %275 = vmatpush2.bf16.msra.mxu0 0
    %276 = vmatprep.subr.bf16.mxu0 0
    %277 = vmatpush2.bf16.msra.mxu0 0
    %278 = vmatprep.mubr.bf16.mxu0 0
    %279 = vmatmul.mubr.bf16.gmra.mxu0 %v172
    %v280 = vpop.f32.mrf.mxu0
    %v281 = vadd.f32 %v196, %v280
    %v282 = vpop.f32.mrf.mxu0
    %v283 = vpop.f32.mrf.mxu0
    %v284 = vpop.f32.mrf.mxu0
    %285 = vdwg.mxu0
    %v286 = vmax.f32 %v281, 0.0
    %v287 = vpack.c.bf16 %v286, %v286
    %s288 = scalar_lea.vmem [#allocation5], 128
    %v289 = vld [vmem:[%s288] sm:$0xf]
    %v290 = vld [vmem:[%s288 + $0x4] sm:$0xf]
    %v291 = vld [vmem:[%s288 + $0x8] sm:$0xf]
    %v292 = vld [vmem:[%s288 + $0xc] sm:$0xf]
    %v293 = vld [vmem:[%s288 + $0x10] sm:$0xf]
    %v294 = vld [vmem:[%s288 + $0x14] sm:$0xf]
    %v295 = vld [vmem:[%s288 + $0x18] sm:$0xf]
    %v296 = vld [vmem:[%s288 + $0x1c] sm:$0xf]
    %v297 = vld [vmem:[%s288 + $0x20] sm:$0xf]
    %v298 = vld [vmem:[%s288 + $0x24] sm:$0xf]
    %v299 = vld [vmem:[%s288 + $0x28] sm:$0xf]
    %v300 = vld [vmem:[%s288 + $0x2c] sm:$0xf]
    %v301 = vld [vmem:[%s288 + $0x30] sm:$0xf]
    %v302 = vld [vmem:[%s288 + $0x34] sm:$0xf]
    %v303 = vld [vmem:[%s288 + $0x38] sm:$0xf]
    %v304 = vld [vmem:[%s288 + $0x3c] sm:$0xf]
    %s305 = scalar_lea.vmem [#allocation7], 2
    %v306 = vld [vmem:[%s305] sm:$0x1]
    %v308 = vlaneseq
    %v309 = vshrl.u32 %v308, 7
    %v310 = vsub.s32 0, %v309
    %v311 = vrot.slane %v306, %v310
    %v329 = vunpack.c.l.b16 %v289
    %v330 = vunpack.c.l.b16 %v290
    %v331 = vunpack.c.l.b16 %v291
    %v332 = vunpack.c.l.b16 %v292
    %v333 = vunpack.c.l.b16 %v293
    %v334 = vunpack.c.l.b16 %v294
    %v335 = vunpack.c.l.b16 %v295
    %v336 = vunpack.c.l.b16 %v296
    %v337 = vunpack.c.l.b16 %v297
    %v338 = vunpack.c.l.b16 %v298
    %v339 = vunpack.c.l.b16 %v299
    %v340 = vunpack.c.l.b16 %v300
    %v341 = vunpack.c.l.b16 %v301
    %v342 = vunpack.c.l.b16 %v302
    %v343 = vunpack.c.l.b16 %v303
    %v344 = vunpack.c.l.b16 %v304
    %v345 = vpack.c.b16 %v330, %v329
    %v346 = vpack.c.b16 %v332, %v331
    %v347 = vpack.c.b16 %v334, %v333
    %v348 = vpack.c.b16 %v336, %v335
    %v349 = vpack.c.b16 %v338, %v337
    %v350 = vpack.c.b16 %v340, %v339
    %v351 = vpack.c.b16 %v342, %v341
    %v352 = vpack.c.b16 %v344, %v343
    %361 = vmatprep.subr.bf16.mxu0 0
    %362 = vmatpush1.bf16.msra.mxu0 %v352
    %363 = vmatprep.subr.bf16.mxu0 0
    %364 = vmatpush1.bf16.msra.mxu0 %v351
    %365 = vmatprep.subr.bf16.mxu0 0
    %366 = vmatpush1.bf16.msra.mxu0 %v350
    %367 = vmatprep.subr.bf16.mxu0 0
    %368 = vmatpush1.bf16.msra.mxu0 %v349
    %369 = vmatprep.subr.bf16.mxu0 0
    %370 = vmatpush1.bf16.msra.mxu0 %v348
    %371 = vmatprep.subr.bf16.mxu0 0
    %372 = vmatpush1.bf16.msra.mxu0 %v347
    %373 = vmatprep.subr.bf16.mxu0 0
    %374 = vmatpush1.bf16.msra.mxu0 %v346
    %375 = vmatprep.subr.bf16.mxu0 0
    %376 = vmatpush1.bf16.msra.mxu0 %v345
    %377 = vmatprep.subr.bf16.mxu0 0
    %378 = vmatpush2.bf16.msra.mxu0 0
    %379 = vmatprep.subr.bf16.mxu0 0
    %380 = vmatpush2.bf16.msra.mxu0 0
    %381 = vmatprep.subr.bf16.mxu0 0
    %382 = vmatpush2.bf16.msra.mxu0 0
    %383 = vmatprep.subr.bf16.mxu0 0
    %384 = vmatpush2.bf16.msra.mxu0 0
    %385 = vmatprep.subr.bf16.mxu0 0
    %386 = vmatpush2.bf16.msra.mxu0 0
    %387 = vmatprep.subr.bf16.mxu0 0
    %388 = vmatpush2.bf16.msra.mxu0 0
    %389 = vmatprep.subr.bf16.mxu0 0
    %390 = vmatpush2.bf16.msra.mxu0 0
    %391 = vmatprep.subr.bf16.mxu0 0
    %392 = vmatpush2.bf16.msra.mxu0 0
    %393 = vmatprep.mubr.bf16.mxu0 0
    %394 = vmatmul.mubr.bf16.gmra.mxu0 %v287
    %v395 = vpop.f32.mrf.mxu0
    %v396 = vadd.f32 %v311, %v395
    %v397 = vpop.f32.mrf.mxu0
    %v398 = vpop.f32.mrf.mxu0
    %v399 = vpop.f32.mrf.mxu0
    %400 = vdwg.mxu0
    %v401 = vmax.f32 %v396, 0.0
    %v402 = vpack.c.bf16 %v401, %v401
    %s403 = scalar_lea.vmem [#allocation5], 192
    %v404 = vld [vmem:[%s403] sm:$0xf]
    %v405 = vld [vmem:[%s403 + $0x4] sm:$0xf]
    %v406 = vld [vmem:[%s403 + $0x8] sm:$0xf]
    %v407 = vld [vmem:[%s403 + $0xc] sm:$0xf]
    %v408 = vld [vmem:[%s403 + $0x10] sm:$0xf]
    %v409 = vld [vmem:[%s403 + $0x14] sm:$0xf]
    %v410 = vld [vmem:[%s403 + $0x18] sm:$0xf]
    %v411 = vld [vmem:[%s403 + $0x1c] sm:$0xf]
    %v412 = vld [vmem:[%s403 + $0x20] sm:$0xf]
    %v413 = vld [vmem:[%s403 + $0x24] sm:$0xf]
    %v414 = vld [vmem:[%s403 + $0x28] sm:$0xf]
    %v415 = vld [vmem:[%s403 + $0x2c] sm:$0xf]
    %v416 = vld [vmem:[%s403 + $0x30] sm:$0xf]
    %v417 = vld [vmem:[%s403 + $0x34] sm:$0xf]
    %v418 = vld [vmem:[%s403 + $0x38] sm:$0xf]
    %v419 = vld [vmem:[%s403 + $0x3c] sm:$0xf]
    %s420 = scalar_lea.vmem [#allocation7], 3
    %v421 = vld [vmem:[%s420] sm:$0x1]
    %v423 = vlaneseq
    %v424 = vshrl.u32 %v423, 7
    %v425 = vsub.s32 0, %v424
    %v426 = vrot.slane %v421, %v425
    %v444 = vunpack.c.l.b16 %v404
    %v445 = vunpack.c.l.b16 %v405
    %v446 = vunpack.c.l.b16 %v406
    %v447 = vunpack.c.l.b16 %v407
    %v448 = vunpack.c.l.b16 %v408
    %v449 = vunpack.c.l.b16 %v409
    %v450 = vunpack.c.l.b16 %v410
    %v451 = vunpack.c.l.b16 %v411
    %v452 = vunpack.c.l.b16 %v412
    %v453 = vunpack.c.l.b16 %v413
    %v454 = vunpack.c.l.b16 %v414
    %v455 = vunpack.c.l.b16 %v415
    %v456 = vunpack.c.l.b16 %v416
    %v457 = vunpack.c.l.b16 %v417
    %v458 = vunpack.c.l.b16 %v418
    %v459 = vunpack.c.l.b16 %v419
    %v460 = vpack.c.b16 %v445, %v444
    %v461 = vpack.c.b16 %v447, %v446
    %v462 = vpack.c.b16 %v449, %v448
    %v463 = vpack.c.b16 %v451, %v450
    %v464 = vpack.c.b16 %v453, %v452
    %v465 = vpack.c.b16 %v455, %v454
    %v466 = vpack.c.b16 %v457, %v456
    %v467 = vpack.c.b16 %v459, %v458
    %476 = vmatprep.subr.bf16.mxu0 0
    %477 = vmatpush1.bf16.msra.mxu0 %v467
    %478 = vmatprep.subr.bf16.mxu0 0
    %479 = vmatpush1.bf16.msra.mxu0 %v466
    %480 = vmatprep.subr.bf16.mxu0 0
    %481 = vmatpush1.bf16.msra.mxu0 %v465
    %482 = vmatprep.subr.bf16.mxu0 0
    %483 = vmatpush1.bf16.msra.mxu0 %v464
    %484 = vmatprep.subr.bf16.mxu0 0
    %485 = vmatpush1.bf16.msra.mxu0 %v463
    %486 = vmatprep.subr.bf16.mxu0 0
    %487 = vmatpush1.bf16.msra.mxu0 %v462
    %488 = vmatprep.subr.bf16.mxu0 0
    %489 = vmatpush1.bf16.msra.mxu0 %v461
    %490 = vmatprep.subr.bf16.mxu0 0
    %491 = vmatpush1.bf16.msra.mxu0 %v460
    %492 = vmatprep.subr.bf16.mxu0 0
    %493 = vmatpush2.bf16.msra.mxu0 0
    %494 = vmatprep.subr.bf16.mxu0 0
    %495 = vmatpush2.bf16.msra.mxu0 0
    %496 = vmatprep.subr.bf16.mxu0 0
    %497 = vmatpush2.bf16.msra.mxu0 0
    %498 = vmatprep.subr.bf16.mxu0 0
    %499 = vmatpush2.bf16.msra.mxu0 0
    %500 = vmatprep.subr.bf16.mxu0 0
    %501 = vmatpush2.bf16.msra.mxu0 0
    %502 = vmatprep.subr.bf16.mxu0 0
    %503 = vmatpush2.bf16.msra.mxu0 0
    %504 = vmatprep.subr.bf16.mxu0 0
    %505 = vmatpush2.bf16.msra.mxu0 0
    %506 = vmatprep.subr.bf16.mxu0 0
    %507 = vmatpush2.bf16.msra.mxu0 0
    %508 = vmatprep.mubr.bf16.mxu0 0
    %509 = vmatmul.mubr.bf16.gmra.mxu0 %v402
    %v510 = vpop.f32.mrf.mxu0
    %v511 = vadd.f32 %v426, %v510
    %v512 = vpop.f32.mrf.mxu0
    %v513 = vpop.f32.mrf.mxu0
    %v514 = vpop.f32.mrf.mxu0
    %515 = vdwg.mxu0
    %v516 = vlaneseq
    %v517 = vand.u32 %v516, 127
    %vm518 = vcmp.lt.s32.totalorder %v517, 11
    %vm519 = vcmp.ge.s32.totalorder %v517, 11
    %vm520 = vcmp.lt.s32.totalorder %v517, 17
    %vm521 = vmand %vm519, %vm520
    %v522 = vsel %vm521, %v511, -1e+30
    %523 = vmax.xlane.f32.xlu0 %v522
    %v524 = vpop.xlane.xlu0 %523
    %v525 = vsub.f32 0.0, %v511
    %v526 = vsub.f32 %v511, %v524
    %v527 = vsel %vm521, %v526, -1e+30
    %v528 = vsel %vm518, %v525, %v527
    %v529 = vmul.f32 %v528, 1.442695
    %v530 = vpow.pop %v529
    %v531 = vsel %vm521, %v530, 0.0
    %532 = vadd.xlane.f32.xlu0 %v531
    %v533 = vpop.xlane.xlu0 %532
    %v534 = vrcp.pop %v533
    %v535 = vmul.f32 1.0, %v534
    %v536 = vadd.f32 %v530, 1.0
    %v537 = vrcp.pop %v536
    %v538 = vmul.f32 1.0, %v537
    %v539 = vmul.f32 %v530, %v535
    %v540 = vsel %vm518, %v538, %v539
    %v541 = vpack.c.bf16 %v540, %v540
    %s542 = scalar_lea.vmem [#allocation5], 256
    %v543 = vld [vmem:[%s542] sm:$0xf]
    %v544 = vld [vmem:[%s542 + $0x4] sm:$0xf]
    %v545 = vld [vmem:[%s542 + $0x8] sm:$0xf]
    %v546 = vld [vmem:[%s542 + $0xc] sm:$0xf]
    %v547 = vld [vmem:[%s542 + $0x10] sm:$0xf]
    %v548 = vld [vmem:[%s542 + $0x14] sm:$0xf]
    %v549 = vld [vmem:[%s542 + $0x18] sm:$0xf]
    %v550 = vld [vmem:[%s542 + $0x1c] sm:$0xf]
    %v551 = vld [vmem:[%s542 + $0x20] sm:$0xf]
    %v552 = vld [vmem:[%s542 + $0x24] sm:$0xf]
    %v553 = vld [vmem:[%s542 + $0x28] sm:$0xf]
    %v554 = vld [vmem:[%s542 + $0x2c] sm:$0xf]
    %v555 = vld [vmem:[%s542 + $0x30] sm:$0xf]
    %v556 = vld [vmem:[%s542 + $0x34] sm:$0xf]
    %v557 = vld [vmem:[%s542 + $0x38] sm:$0xf]
    %v558 = vld [vmem:[%s542 + $0x3c] sm:$0xf]
    %s559 = scalar_lea.vmem [#allocation7], 4
    %v560 = vld [vmem:[%s559] sm:$0x1]
    %v562 = vlaneseq
    %v563 = vshrl.u32 %v562, 7
    %v564 = vsub.s32 0, %v563
    %v565 = vrot.slane %v560, %v564
    %v583 = vunpack.c.l.b16 %v543
    %v584 = vunpack.c.l.b16 %v544
    %v585 = vunpack.c.l.b16 %v545
    %v586 = vunpack.c.l.b16 %v546
    %v587 = vunpack.c.l.b16 %v547
    %v588 = vunpack.c.l.b16 %v548
    %v589 = vunpack.c.l.b16 %v549
    %v590 = vunpack.c.l.b16 %v550
    %v591 = vunpack.c.l.b16 %v551
    %v592 = vunpack.c.l.b16 %v552
    %v593 = vunpack.c.l.b16 %v553
    %v594 = vunpack.c.l.b16 %v554
    %v595 = vunpack.c.l.b16 %v555
    %v596 = vunpack.c.l.b16 %v556
    %v597 = vunpack.c.l.b16 %v557
    %v598 = vunpack.c.l.b16 %v558
    %v599 = vpack.c.b16 %v584, %v583
    %v600 = vpack.c.b16 %v586, %v585
    %v601 = vpack.c.b16 %v588, %v587
    %v602 = vpack.c.b16 %v590, %v589
    %v603 = vpack.c.b16 %v592, %v591
    %v604 = vpack.c.b16 %v594, %v593
    %v605 = vpack.c.b16 %v596, %v595
    %v606 = vpack.c.b16 %v598, %v597
    %615 = vmatprep.subr.bf16.mxu0 0
    %616 = vmatpush1.bf16.msra.mxu0 %v606
    %617 = vmatprep.subr.bf16.mxu0 0
    %618 = vmatpush1.bf16.msra.mxu0 %v605
    %619 = vmatprep.subr.bf16.mxu0 0
    %620 = vmatpush1.bf16.msra.mxu0 %v604
    %621 = vmatprep.subr.bf16.mxu0 0
    %622 = vmatpush1.bf16.msra.mxu0 %v603
    %623 = vmatprep.subr.bf16.mxu0 0
    %624 = vmatpush1.bf16.msra.mxu0 %v602
    %625 = vmatprep.subr.bf16.mxu0 0
    %626 = vmatpush1.bf16.msra.mxu0 %v601
    %627 = vmatprep.subr.bf16.mxu0 0
    %628 = vmatpush1.bf16.msra.mxu0 %v600
    %629 = vmatprep.subr.bf16.mxu0 0
    %630 = vmatpush1.bf16.msra.mxu0 %v599
    %631 = vmatprep.subr.bf16.mxu0 0
    %632 = vmatpush2.bf16.msra.mxu0 0
    %633 = vmatprep.subr.bf16.mxu0 0
    %634 = vmatpush2.bf16.msra.mxu0 0
    %635 = vmatprep.subr.bf16.mxu0 0
    %636 = vmatpush2.bf16.msra.mxu0 0
    %637 = vmatprep.subr.bf16.mxu0 0
    %638 = vmatpush2.bf16.msra.mxu0 0
    %639 = vmatprep.subr.bf16.mxu0 0
    %640 = vmatpush2.bf16.msra.mxu0 0
    %641 = vmatprep.subr.bf16.mxu0 0
    %642 = vmatpush2.bf16.msra.mxu0 0
    %643 = vmatprep.subr.bf16.mxu0 0
    %644 = vmatpush2.bf16.msra.mxu0 0
    %645 = vmatprep.subr.bf16.mxu0 0
    %646 = vmatpush2.bf16.msra.mxu0 0
    %647 = vmatprep.mubr.bf16.mxu0 0
    %648 = vmatmul.mubr.bf16.gmra.mxu0 %v541
    %v649 = vpop.f32.mrf.mxu0
    %v650 = vadd.f32 %v565, %v649
    %v651 = vpop.f32.mrf.mxu0
    %v652 = vpop.f32.mrf.mxu0
    %v653 = vpop.f32.mrf.mxu0
    %654 = vdwg.mxu0
    %v655 = vmax.f32 %v650, 0.0
    %v656 = vpack.c.bf16 %v655, %v655
    %s657 = scalar_lea.vmem [#allocation5], 320
    %v658 = vld [vmem:[%s657] sm:$0xf]
    %v659 = vld [vmem:[%s657 + $0x4] sm:$0xf]
    %v660 = vld [vmem:[%s657 + $0x8] sm:$0xf]
    %v661 = vld [vmem:[%s657 + $0xc] sm:$0xf]
    %v662 = vld [vmem:[%s657 + $0x10] sm:$0xf]
    %v663 = vld [vmem:[%s657 + $0x14] sm:$0xf]
    %v664 = vld [vmem:[%s657 + $0x18] sm:$0xf]
    %v665 = vld [vmem:[%s657 + $0x1c] sm:$0xf]
    %v666 = vld [vmem:[%s657 + $0x20] sm:$0xf]
    %v667 = vld [vmem:[%s657 + $0x24] sm:$0xf]
    %v668 = vld [vmem:[%s657 + $0x28] sm:$0xf]
    %v669 = vld [vmem:[%s657 + $0x2c] sm:$0xf]
    %v670 = vld [vmem:[%s657 + $0x30] sm:$0xf]
    %v671 = vld [vmem:[%s657 + $0x34] sm:$0xf]
    %v672 = vld [vmem:[%s657 + $0x38] sm:$0xf]
    %v673 = vld [vmem:[%s657 + $0x3c] sm:$0xf]
    %s674 = scalar_lea.vmem [#allocation7], 5
    %v675 = vld [vmem:[%s674] sm:$0x1]
    %v677 = vlaneseq
    %v678 = vshrl.u32 %v677, 7
    %v679 = vsub.s32 0, %v678
    %v680 = vrot.slane %v675, %v679
    %v698 = vunpack.c.l.b16 %v658
    %v699 = vunpack.c.l.b16 %v659
    %v700 = vunpack.c.l.b16 %v660
    %v701 = vunpack.c.l.b16 %v661
    %v702 = vunpack.c.l.b16 %v662
    %v703 = vunpack.c.l.b16 %v663
    %v704 = vunpack.c.l.b16 %v664
    %v705 = vunpack.c.l.b16 %v665
    %v706 = vunpack.c.l.b16 %v666
    %v707 = vunpack.c.l.b16 %v667
    %v708 = vunpack.c.l.b16 %v668
    %v709 = vunpack.c.l.b16 %v669
    %v710 = vunpack.c.l.b16 %v670
    %v711 = vunpack.c.l.b16 %v671
    %v712 = vunpack.c.l.b16 %v672
    %v713 = vunpack.c.l.b16 %v673
    %v714 = vpack.c.b16 %v699, %v698
    %v715 = vpack.c.b16 %v701, %v700
    %v716 = vpack.c.b16 %v703, %v702
    %v717 = vpack.c.b16 %v705, %v704
    %v718 = vpack.c.b16 %v707, %v706
    %v719 = vpack.c.b16 %v709, %v708
    %v720 = vpack.c.b16 %v711, %v710
    %v721 = vpack.c.b16 %v713, %v712
    %730 = vmatprep.subr.bf16.mxu0 0
    %731 = vmatpush1.bf16.msra.mxu0 %v721
    %732 = vmatprep.subr.bf16.mxu0 0
    %733 = vmatpush1.bf16.msra.mxu0 %v720
    %734 = vmatprep.subr.bf16.mxu0 0
    %735 = vmatpush1.bf16.msra.mxu0 %v719
    %736 = vmatprep.subr.bf16.mxu0 0
    %737 = vmatpush1.bf16.msra.mxu0 %v718
    %738 = vmatprep.subr.bf16.mxu0 0
    %739 = vmatpush1.bf16.msra.mxu0 %v717
    %740 = vmatprep.subr.bf16.mxu0 0
    %741 = vmatpush1.bf16.msra.mxu0 %v716
    %742 = vmatprep.subr.bf16.mxu0 0
    %743 = vmatpush1.bf16.msra.mxu0 %v715
    %744 = vmatprep.subr.bf16.mxu0 0
    %745 = vmatpush1.bf16.msra.mxu0 %v714
    %746 = vmatprep.subr.bf16.mxu0 0
    %747 = vmatpush2.bf16.msra.mxu0 0
    %748 = vmatprep.subr.bf16.mxu0 0
    %749 = vmatpush2.bf16.msra.mxu0 0
    %750 = vmatprep.subr.bf16.mxu0 0
    %751 = vmatpush2.bf16.msra.mxu0 0
    %752 = vmatprep.subr.bf16.mxu0 0
    %753 = vmatpush2.bf16.msra.mxu0 0
    %754 = vmatprep.subr.bf16.mxu0 0
    %755 = vmatpush2.bf16.msra.mxu0 0
    %756 = vmatprep.subr.bf16.mxu0 0
    %757 = vmatpush2.bf16.msra.mxu0 0
    %758 = vmatprep.subr.bf16.mxu0 0
    %759 = vmatpush2.bf16.msra.mxu0 0
    %760 = vmatprep.subr.bf16.mxu0 0
    %761 = vmatpush2.bf16.msra.mxu0 0
    %762 = vmatprep.mubr.bf16.mxu0 0
    %763 = vmatmul.mubr.bf16.gmra.mxu0 %v656
    %v764 = vpop.f32.mrf.mxu0
    %v765 = vadd.f32 %v680, %v764
    %v766 = vpop.f32.mrf.mxu0
    %v767 = vpop.f32.mrf.mxu0
    %v768 = vpop.f32.mrf.mxu0
    %769 = vdwg.mxu0
    %v770 = vmax.f32 %v765, 0.0
    %v771 = vpack.c.bf16 %v770, %v770
    %s772 = scalar_lea.vmem [#allocation5], 384
    %v773 = vld [vmem:[%s772] sm:$0xf]
    %v774 = vld [vmem:[%s772 + $0x4] sm:$0xf]
    %v775 = vld [vmem:[%s772 + $0x8] sm:$0xf]
    %v776 = vld [vmem:[%s772 + $0xc] sm:$0xf]
    %v777 = vld [vmem:[%s772 + $0x10] sm:$0xf]
    %v778 = vld [vmem:[%s772 + $0x14] sm:$0xf]
    %v779 = vld [vmem:[%s772 + $0x18] sm:$0xf]
    %v780 = vld [vmem:[%s772 + $0x1c] sm:$0xf]
    %v781 = vld [vmem:[%s772 + $0x20] sm:$0xf]
    %v782 = vld [vmem:[%s772 + $0x24] sm:$0xf]
    %v783 = vld [vmem:[%s772 + $0x28] sm:$0xf]
    %v784 = vld [vmem:[%s772 + $0x2c] sm:$0xf]
    %v785 = vld [vmem:[%s772 + $0x30] sm:$0xf]
    %v786 = vld [vmem:[%s772 + $0x34] sm:$0xf]
    %v787 = vld [vmem:[%s772 + $0x38] sm:$0xf]
    %v788 = vld [vmem:[%s772 + $0x3c] sm:$0xf]
    %s789 = scalar_lea.vmem [#allocation7], 6
    %v790 = vld [vmem:[%s789] sm:$0x1]
    %v792 = vlaneseq
    %v793 = vshrl.u32 %v792, 7
    %v794 = vsub.s32 0, %v793
    %v795 = vrot.slane %v790, %v794
    %v813 = vunpack.c.l.b16 %v773
    %v814 = vunpack.c.l.b16 %v774
    %v815 = vunpack.c.l.b16 %v775
    %v816 = vunpack.c.l.b16 %v776
    %v817 = vunpack.c.l.b16 %v777
    %v818 = vunpack.c.l.b16 %v778
    %v819 = vunpack.c.l.b16 %v779
    %v820 = vunpack.c.l.b16 %v780
    %v821 = vunpack.c.l.b16 %v781
    %v822 = vunpack.c.l.b16 %v782
    %v823 = vunpack.c.l.b16 %v783
    %v824 = vunpack.c.l.b16 %v784
    %v825 = vunpack.c.l.b16 %v785
    %v826 = vunpack.c.l.b16 %v786
    %v827 = vunpack.c.l.b16 %v787
    %v828 = vunpack.c.l.b16 %v788
    %v829 = vpack.c.b16 %v814, %v813
    %v830 = vpack.c.b16 %v816, %v815
    %v831 = vpack.c.b16 %v818, %v817
    %v832 = vpack.c.b16 %v820, %v819
    %v833 = vpack.c.b16 %v822, %v821
    %v834 = vpack.c.b16 %v824, %v823
    %v835 = vpack.c.b16 %v826, %v825
    %v836 = vpack.c.b16 %v828, %v827
    %845 = vmatprep.subr.bf16.mxu0 0
    %846 = vmatpush1.bf16.msra.mxu0 %v836
    %847 = vmatprep.subr.bf16.mxu0 0
    %848 = vmatpush1.bf16.msra.mxu0 %v835
    %849 = vmatprep.subr.bf16.mxu0 0
    %850 = vmatpush1.bf16.msra.mxu0 %v834
    %851 = vmatprep.subr.bf16.mxu0 0
    %852 = vmatpush1.bf16.msra.mxu0 %v833
    %853 = vmatprep.subr.bf16.mxu0 0
    %854 = vmatpush1.bf16.msra.mxu0 %v832
    %855 = vmatprep.subr.bf16.mxu0 0
    %856 = vmatpush1.bf16.msra.mxu0 %v831
    %857 = vmatprep.subr.bf16.mxu0 0
    %858 = vmatpush1.bf16.msra.mxu0 %v830
    %859 = vmatprep.subr.bf16.mxu0 0
    %860 = vmatpush1.bf16.msra.mxu0 %v829
    %861 = vmatprep.subr.bf16.mxu0 0
    %862 = vmatpush2.bf16.msra.mxu0 0
    %863 = vmatprep.subr.bf16.mxu0 0
    %864 = vmatpush2.bf16.msra.mxu0 0
    %865 = vmatprep.subr.bf16.mxu0 0
    %866 = vmatpush2.bf16.msra.mxu0 0
    %867 = vmatprep.subr.bf16.mxu0 0
    %868 = vmatpush2.bf16.msra.mxu0 0
    %869 = vmatprep.subr.bf16.mxu0 0
    %870 = vmatpush2.bf16.msra.mxu0 0
    %871 = vmatprep.subr.bf16.mxu0 0
    %872 = vmatpush2.bf16.msra.mxu0 0
    %873 = vmatprep.subr.bf16.mxu0 0
    %874 = vmatpush2.bf16.msra.mxu0 0
    %875 = vmatprep.subr.bf16.mxu0 0
    %876 = vmatpush2.bf16.msra.mxu0 0
    %877 = vmatprep.mubr.bf16.mxu0 0
    %878 = vmatmul.mubr.bf16.gmra.mxu0 %v771
    %v879 = vpop.f32.mrf.mxu0
    %v880 = vadd.f32 %v795, %v879
    %v881 = vpop.f32.mrf.mxu0
    %v882 = vpop.f32.mrf.mxu0
    %v883 = vpop.f32.mrf.mxu0
    %884 = vdwg.mxu0
    %v885 = vmax.f32 %v880, 0.0
    %v886 = vpack.c.bf16 %v885, %v885
    %s887 = scalar_lea.vmem [#allocation5], 448
    %v888 = vld [vmem:[%s887] sm:$0xf]
    %v889 = vld [vmem:[%s887 + $0x4] sm:$0xf]
    %v890 = vld [vmem:[%s887 + $0x8] sm:$0xf]
    %v891 = vld [vmem:[%s887 + $0xc] sm:$0xf]
    %v892 = vld [vmem:[%s887 + $0x10] sm:$0xf]
    %v893 = vld [vmem:[%s887 + $0x14] sm:$0xf]
    %v894 = vld [vmem:[%s887 + $0x18] sm:$0xf]
    %v895 = vld [vmem:[%s887 + $0x1c] sm:$0xf]
    %v896 = vld [vmem:[%s887 + $0x20] sm:$0xf]
    %v897 = vld [vmem:[%s887 + $0x24] sm:$0xf]
    %v898 = vld [vmem:[%s887 + $0x28] sm:$0xf]
    %v899 = vld [vmem:[%s887 + $0x2c] sm:$0xf]
    %v900 = vld [vmem:[%s887 + $0x30] sm:$0xf]
    %v901 = vld [vmem:[%s887 + $0x34] sm:$0xf]
    %v902 = vld [vmem:[%s887 + $0x38] sm:$0xf]
    %v903 = vld [vmem:[%s887 + $0x3c] sm:$0xf]
    %s904 = scalar_lea.vmem [#allocation7], 7
    %v905 = vld [vmem:[%s904] sm:$0x1]
    %v907 = vlaneseq
    %v908 = vshrl.u32 %v907, 7
    %v909 = vsub.s32 0, %v908
    %v910 = vrot.slane %v905, %v909
    %v928 = vunpack.c.l.b16 %v888
    %v929 = vunpack.c.l.b16 %v889
    %v930 = vunpack.c.l.b16 %v890
    %v931 = vunpack.c.l.b16 %v891
    %v932 = vunpack.c.l.b16 %v892
    %v933 = vunpack.c.l.b16 %v893
    %v934 = vunpack.c.l.b16 %v894
    %v935 = vunpack.c.l.b16 %v895
    %v936 = vunpack.c.l.b16 %v896
    %v937 = vunpack.c.l.b16 %v897
    %v938 = vunpack.c.l.b16 %v898
    %v939 = vunpack.c.l.b16 %v899
    %v940 = vunpack.c.l.b16 %v900
    %v941 = vunpack.c.l.b16 %v901
    %v942 = vunpack.c.l.b16 %v902
    %v943 = vunpack.c.l.b16 %v903
    %v944 = vpack.c.b16 %v929, %v928
    %v945 = vpack.c.b16 %v931, %v930
    %v946 = vpack.c.b16 %v933, %v932
    %v947 = vpack.c.b16 %v935, %v934
    %v948 = vpack.c.b16 %v937, %v936
    %v949 = vpack.c.b16 %v939, %v938
    %v950 = vpack.c.b16 %v941, %v940
    %v951 = vpack.c.b16 %v943, %v942
    %960 = vmatprep.subr.bf16.mxu0 0
    %961 = vmatpush1.bf16.msra.mxu0 %v951
    %962 = vmatprep.subr.bf16.mxu0 0
    %963 = vmatpush1.bf16.msra.mxu0 %v950
    %964 = vmatprep.subr.bf16.mxu0 0
    %965 = vmatpush1.bf16.msra.mxu0 %v949
    %966 = vmatprep.subr.bf16.mxu0 0
    %967 = vmatpush1.bf16.msra.mxu0 %v948
    %968 = vmatprep.subr.bf16.mxu0 0
    %969 = vmatpush1.bf16.msra.mxu0 %v947
    %970 = vmatprep.subr.bf16.mxu0 0
    %971 = vmatpush1.bf16.msra.mxu0 %v946
    %972 = vmatprep.subr.bf16.mxu0 0
    %973 = vmatpush1.bf16.msra.mxu0 %v945
    %974 = vmatprep.subr.bf16.mxu0 0
    %975 = vmatpush1.bf16.msra.mxu0 %v944
    %976 = vmatprep.subr.bf16.mxu0 0
    %977 = vmatpush2.bf16.msra.mxu0 0
    %978 = vmatprep.subr.bf16.mxu0 0
    %979 = vmatpush2.bf16.msra.mxu0 0
    %980 = vmatprep.subr.bf16.mxu0 0
    %981 = vmatpush2.bf16.msra.mxu0 0
    %982 = vmatprep.subr.bf16.mxu0 0
    %983 = vmatpush2.bf16.msra.mxu0 0
    %984 = vmatprep.subr.bf16.mxu0 0
    %985 = vmatpush2.bf16.msra.mxu0 0
    %986 = vmatprep.subr.bf16.mxu0 0
    %987 = vmatpush2.bf16.msra.mxu0 0
    %988 = vmatprep.subr.bf16.mxu0 0
    %989 = vmatpush2.bf16.msra.mxu0 0
    %990 = vmatprep.subr.bf16.mxu0 0
    %991 = vmatpush2.bf16.msra.mxu0 0
    %992 = vmatprep.mubr.bf16.mxu0 0
    %993 = vmatmul.mubr.bf16.gmra.mxu0 %v886
    %v994 = vpop.f32.mrf.mxu0
    %v995 = vadd.f32 %v910, %v994
    %v996 = vpop.f32.mrf.mxu0
    %v997 = vpop.f32.mrf.mxu0
    %v998 = vpop.f32.mrf.mxu0
    %999 = vdwg.mxu0
    %v1000 = vadd.f32 %v540, %v995
    %vm1001 = vcmask 261120
    %1002 = vst.msk [vmem:[%s3] sm:$0xff] %vm1001, %v1000
    // Predicated region
    $region26: #{tnn_forward.1} parent=1 // pred_check
      _
    $region27: #{tnn_forward.1} parent=1 // pred_check_branch
      %1004 = sbr.rel (0) target = $region29
    $region28: #{tnn_forward.1} parent=1 // pred_region
      _
    $region29: #{tnn_forward.1} parent=1 // pred_fallthru
      _
    // Predicated region
    $region30: #{tnn_forward.1} parent=1 // pred_check
      _
    $region31: #{tnn_forward.1} parent=1 // pred_check_branch
      %1006 = sbr.rel (0) target = $region33
    $region32: #{tnn_forward.1} parent=1 // pred_region
      _
    $region33: #{tnn_forward.1} parent=1 // pred_fallthru
      _
    %1007 = vsyncpa [#allocation4], 1
    %1008 = vsyncpa [#allocation6], 1

</llo_original>
